<compile_context>
chip_gen: v7x
topology: tpu7x:2x2x1
jax: 0.10.0
libtpu: 0.0.40
codegen_flags: <defaults>
</compile_context>

<pallas_src>
import functools

import jax
import jax.numpy as jnp
from jax.experimental import pallas as pl
from jax.experimental.pallas import tpu as pltpu


def _focal_loss_kernel(src_ref, tok_ref, out_ref, *, alpha, gamma, num_rows,
                       block_rows):
    i = pl.program_id(0)

    @pl.when(i == 0)
    def _init():
        out_ref[...] = jnp.zeros_like(out_ref)

    src = src_ref[...].astype(jnp.float32)       # (TB, V)
    tok = tok_ref[...]                           # (TB, T) int32, pad = -1
    tb, v = src.shape
    t_max = tok.shape[1]

    # Build the multi-hot target on the fly: target[r, c] = any_t(tok[r, t] == c).
    # Padding value -1 never matches a lane index, duplicates are idempotent (OR).
    lane_id = jax.lax.broadcasted_iota(jnp.int32, (tb, v), 1)
    is_pos = lane_id == tok[:, 0:1]
    for t in range(1, t_max):
        is_pos = jnp.logical_or(is_pos, lane_id == tok[:, t:t + 1])

    eps = jnp.float32(1e-8)
    p = jnp.clip(src, eps, jnp.float32(1.0) - eps)

    # Targets are exactly 0/1 -> select the positive/negative branch pointwise.
    log_p = jnp.log(p)
    log_1mp = jnp.log(1.0 - p)
    bce = -jnp.where(is_pos, log_p, log_1mp)
    one_minus_pt = jnp.where(is_pos, 1.0 - p, p)         # = 1 - p_t
    alpha_t = jnp.where(is_pos, jnp.float32(alpha), jnp.float32(1.0 - alpha))

    if gamma == 2.0:
        focal_w = alpha_t * (one_minus_pt * one_minus_pt)
    elif gamma == 1.0:
        focal_w = alpha_t * one_minus_pt
    elif gamma == 0.0:
        focal_w = alpha_t
    else:
        focal_w = alpha_t * jnp.power(one_minus_pt, jnp.float32(gamma))

    loss = focal_w * bce

    # Mask rows past the true batch size (only when the last tile is ragged).
    if num_rows % block_rows != 0:
        row_id = i * block_rows + jax.lax.broadcasted_iota(jnp.int32, (tb, v), 0)
        loss = jnp.where(row_id < num_rows, loss, jnp.float32(0.0))

    out_ref[...] += jnp.sum(loss)


def pg_focal_loss_prob(src, tgt_ids, *, alpha=0.25, gamma=2.0, reduction="sum",
                       block_rows=None):
    """src: (B, V) probabilities (f32 or bf16 — cast to f32 in-kernel).
    tgt_ids: (B, T_max) int32 token ids, padded with -1 ("no token").
    Returns scalar f32 loss ('sum' or 'mean' reduction)."""
    B, V = src.shape
    assert tgt_ids.ndim == 2 and tgt_ids.shape[0] == B and tgt_ids.shape[1] >= 1
    T = tgt_ids.shape[1]

    if block_rows is None:
        # ~2 MiB of f32 src per block (4 MiB double-buffered), multiple of 8 rows,
        # never larger than the batch rounded up to 8.
        target_elems = 512 * 1024
        tb = max(8, (target_elems // max(V, 1)) // 8 * 8)
        b_rounded = (B + 7) // 8 * 8
        block_rows = int(min(tb, 2048, b_rounded))

    grid = (pl.cdiv(B, block_rows),)

    kernel = functools.partial(
        _focal_loss_kernel,
        alpha=float(alpha), gamma=float(gamma),
        num_rows=B, block_rows=block_rows)

    total = pl.pallas_call(
        kernel,
        out_shape=jax.ShapeDtypeStruct((1, 1), jnp.float32),
        grid_spec=pltpu.PrefetchScalarGridSpec(
            num_scalar_prefetch=0,
            grid=grid,
            in_specs=[
                pl.BlockSpec((block_rows, V), lambda i: (i, 0)),
                pl.BlockSpec((block_rows, T), lambda i: (i, 0)),
            ],
            out_specs=pl.BlockSpec((1, 1), lambda i: (0, 0)),
        ),
        compiler_params=pltpu.CompilerParams(
            dimension_semantics=("arbitrary",),
            vmem_limit_bytes=32 * 1024 * 1024,
        ),
    )(src, tgt_ids.astype(jnp.int32))

    total = total[0, 0]
    if reduction == "sum":
        return total
    if reduction == "mean":
        return total / jnp.float32(B * V)
    # TODO(synk): reduction='none' (per-element (B, V) loss map) needs a tiled (TB, V)
    # output kernel; only 'sum' / 'mean' are implemented here.
    raise NotImplementedError("reduction must be 'sum' or 'mean'")


def _focal_loss_ref(src, tgt_ids, alpha=0.25, gamma=2.0, reduction="sum"):
    """Plain-JAX reference with identical semantics (for sanity check)."""
    B, V = src.shape
    lane = jnp.arange(V, dtype=jnp.int32)[None, None, :]
    tgt = jnp.any(tgt_ids[:, :, None] == lane, axis=1).astype(jnp.float32)
    p = jnp.clip(src.astype(jnp.float32), 1e-8, 1.0 - 1e-8)
    bce = -(tgt * jnp.log(p) + (1.0 - tgt) * jnp.log(1.0 - p))
    p_t = p * tgt + (1.0 - p) * (1.0 - tgt)
    alpha_t = alpha * tgt + (1.0 - alpha) * (1.0 - tgt)
    focal_w = alpha_t * (1.0 - p_t) ** gamma
    loss = focal_w * bce
    if reduction == "sum":
        return jnp.sum(loss)
    if reduction == "mean":
        return jnp.mean(loss)
    return loss


if __name__ == "__main__":
    key = jax.random.PRNGKey(0)
    k1, k2, k3, k4 = jax.random.split(key, 4)

    # Case 1: batch=8, vocab=256, up to 3 target tokens per row (last slot padded).
    B, V, T = 8, 256, 3
    src = jax.random.uniform(k1, (B, V), dtype=jnp.float32, minval=0.0, maxval=1.0)
    tgt_ids = jax.random.randint(k2, (B, T), minval=0, maxval=V, dtype=jnp.int32)
    tgt_ids = tgt_ids.at[:, -1].set(-1)   # exercise the "-1 = no token" padding

    loss = jax.block_until_ready(pg_focal_loss_prob(src, tgt_ids))
    ref = jax.block_until_ready(_focal_loss_ref(src, tgt_ids))
    assert jnp.allclose(loss, ref, rtol=1e-5, atol=1e-5), (loss, ref)

    # Case 2: ragged batch (B not a multiple of the 8-row tile) + 'mean' reduction.
    B2, V2, T2 = 5, 128, 2
    src2 = jax.random.uniform(k3, (B2, V2), dtype=jnp.float32, minval=0.0, maxval=1.0)
    tgt2 = jax.random.randint(k4, (B2, T2), minval=0, maxval=V2, dtype=jnp.int32)

    loss2 = jax.block_until_ready(pg_focal_loss_prob(src2, tgt2, reduction="mean"))
    ref2 = jax.block_until_ready(_focal_loss_ref(src2, tgt2, reduction="mean"))
    assert jnp.allclose(loss2, ref2, rtol=1e-5, atol=1e-5), (loss2, ref2)

    print("KERNEL_OK")
</pallas_src>

<mosaic_0001>
module attributes {stable_mosaic.version = 11 : i64} {
  func.func @_focal_loss_kernel(%arg0: i32, %arg1: memref<8x256xf32, #tpu.memory_space<vmem>>, %arg2: memref<8x3xi32, #tpu.memory_space<vmem>>, %arg3: memref<1x1xf32, #tpu.memory_space<vmem>>) attributes {dimension_semantics = [#tpu.dimension_semantics<arbitrary>], iteration_bounds = array<i64: 1>, scalar_prefetch = 0 : i64, scratch_operands = 0 : i64, tpu.core_type = #tpu.core_type<tc>, window_params = [{transform_indices = @transform_0, window_bounds = array<i64: 8, 256>}, {transform_indices = @transform_1, window_bounds = array<i64: 8, 3>}, {pipeline_mode = #tpu.pipeline_mode<synchronous>, transform_indices = @transform_2, window_bounds = array<i64: 1, 1>}]} {
    %c0_i32 = arith.constant 0 : i32
    %0 = arith.cmpi eq, %arg0, %c0_i32 : i32
    %1 = arith.extui %0 : i1 to i32
    %c0_i32_0 = arith.constant 0 : i32
    %2 = arith.cmpi ne, %1, %c0_i32_0 : i32
    scf.if %2 {
      %cst_16 = arith.constant 0.000000e+00 : f32
      %46 = vector.broadcast %cst_16 : f32 to vector<1x1xf32>
      %c0_17 = arith.constant 0 : index
      %c0_18 = arith.constant 0 : index
      %47 = vector.load %arg3[%c0_17, %c0_18] : memref<1x1xf32, #tpu.memory_space<vmem>>, vector<1x1xf32>
      tpu.vector_store %arg3[%c0_17, %c0_18], %46 {strides = array<i32>} : memref<1x1xf32, #tpu.memory_space<vmem>>, vector<1x1xf32>,
    } else {
    }
    %c0 = arith.constant 0 : index
    %c0_1 = arith.constant 0 : index
    %3 = vector.load %arg1[%c0, %c0_1] : memref<8x256xf32, #tpu.memory_space<vmem>>, vector<8x256xf32>
    %c0_2 = arith.constant 0 : index
    %c0_3 = arith.constant 0 : index
    %4 = vector.load %arg2[%c0_2, %c0_3] : memref<8x3xi32, #tpu.memory_space<vmem>>, vector<8x3xi32>
    %5 = tpu.iota {dimensions = array<i32: 1>} : vector<8x256xi32>
    %6 = vector.extract_strided_slice %4 {offsets = [0, 0], sizes = [8, 1], strides = [1, 1]} : vector<8x3xi32> to vector<8x1xi32>
    %7 = vector.broadcast %6 : vector<8x1xi32> to vector<8x256xi32>
    %8 = arith.cmpi eq, %5, %7 : vector<8x256xi32>
    %9 = vector.extract_strided_slice %4 {offsets = [0, 1], sizes = [8, 1], strides = [1, 1]} : vector<8x3xi32> to vector<8x1xi32>
    %10 = vector.broadcast %9 : vector<8x1xi32> to vector<8x256xi32>
    %11 = arith.cmpi eq, %5, %10 : vector<8x256xi32>
    %12 = arith.ori %8, %11 : vector<8x256xi1>
    %13 = vector.extract_strided_slice %4 {offsets = [0, 2], sizes = [8, 1], strides = [1, 1]} : vector<8x3xi32> to vector<8x1xi32>
    %14 = vector.broadcast %13 : vector<8x1xi32> to vector<8x256xi32>
    %15 = arith.cmpi eq, %5, %14 : vector<8x256xi32>
    %16 = arith.ori %12, %15 : vector<8x256xi1>
    %cst = arith.constant 1.000000e+00 : f32
    %cst_4 = arith.constant 9.99999993E-9 : f32
    %17 = arith.subf %cst, %cst_4 : f32
    %cst_5 = arith.constant 9.99999993E-9 : f32
    %18 = vector.broadcast %cst_5 : f32 to vector<8x256xf32>
    %19 = arith.maximumf %18, %3 : vector<8x256xf32>
    %20 = vector.broadcast %17 : f32 to vector<8x256xf32>
    %21 = arith.minimumf %20, %19 : vector<8x256xf32>
    %22 = math.log %21 : vector<8x256xf32>
    %cst_6 = arith.constant 1.000000e+00 : f32
    %23 = vector.broadcast %cst_6 : f32 to vector<8x256xf32>
    %24 = arith.subf %23, %21 : vector<8x256xf32>
    %25 = math.log %24 : vector<8x256xf32>
    %26 = arith.select %16, %22, %25 : vector<8x256xi1>, vector<8x256xf32>
    %cst_7 = arith.constant 0.000000e+00 : f32
    %27 = vector.broadcast %cst_7 : f32 to vector<8x256xf32>
    %28 = arith.subf %27, %26 : vector<8x256xf32>
    %cst_8 = arith.constant 1.000000e+00 : f32
    %29 = vector.broadcast %cst_8 : f32 to vector<8x256xf32>
    %30 = arith.subf %29, %21 : vector<8x256xf32>
    %31 = arith.select %16, %30, %21 : vector<8x256xi1>, vector<8x256xf32>
    %cst_9 = arith.constant 2.500000e-01 : f32
    %cst_10 = arith.constant 7.500000e-01 : f32
    %32 = vector.broadcast %cst_9 : f32 to vector<8x256xf32>
    %33 = vector.broadcast %cst_10 : f32 to vector<8x256xf32>
    %34 = arith.select %16, %32, %33 : vector<8x256xi1>, vector<8x256xf32>
    %35 = arith.mulf %31, %31 : vector<8x256xf32>
    %36 = arith.mulf %34, %35 : vector<8x256xf32>
    %37 = arith.mulf %36, %28 : vector<8x256xf32>
    %c0_11 = arith.constant 0 : index
    %c0_12 = arith.constant 0 : index
    %38 = vector.load %arg3[%c0_11, %c0_12] : memref<1x1xf32, #tpu.memory_space<vmem>>, vector<1x1xf32>
    %39 = vector.shape_cast %37 : vector<8x256xf32> to vector<1x8x256xf32>
    %cst_13 = arith.constant dense<0.000000e+00> : vector<1xf32>
    %40 = vector.multi_reduction <add>, %39, %cst_13 [1, 2] : vector<1x8x256xf32> to vector<1xf32>
    %41 = vector.shape_cast %40 : vector<1xf32> to vector<1x1x1xf32>
    %42 = vector.extract %41[0, 0, 0] : f32 from vector<1x1x1xf32>
    %43 = vector.broadcast %42 : f32 to vector<1x1xf32>
    %44 = arith.addf %38, %43 : vector<1x1xf32>
    %c0_14 = arith.constant 0 : index
    %c0_15 = arith.constant 0 : index
    %45 = vector.load %arg3[%c0_14, %c0_15] : memref<1x1xf32, #tpu.memory_space<vmem>>, vector<1x1xf32>
    tpu.vector_store %arg3[%c0_14, %c0_15], %44 {strides = array<i32>} : memref<1x1xf32, #tpu.memory_space<vmem>>, vector<1x1xf32>,
    return
  }
  func.func @transform_0(%arg0: i32) -> (i32, i32) {
    %c0_i32 = arith.constant 0 : i32
    %c0_i32_0 = arith.constant 0 : i32
    return %arg0, %c0_i32 : i32, i32
  }
  func.func @transform_1(%arg0: i32) -> (i32, i32) {
    %c0_i32 = arith.constant 0 : i32
    %c0_i32_0 = arith.constant 0 : i32
    return %arg0, %c0_i32 : i32, i32
  }
  func.func @transform_2(%arg0: i32) -> (i32, i32) {
    %c0_i32 = arith.constant 0 : i32
    %c0_i32_0 = arith.constant 0 : i32
    %c0_i32_1 = arith.constant 0 : i32
    return %c0_i32, %c0_i32_0 : i32, i32
  }
}

</mosaic_0001>

<llo_original>
// kernel: tpu_custom_call.1
$region0: #{tpu_custom_call.1}
  #allocation0 [shape = 'u32[]', space=smem, size = 0x4, offset = 0x4, fixed_abs, tag = 'smem constant byte address 0x4 - core index']
  #allocation1 [shape = 'u32[144,128]{1,0:T(1,128)}', space=vmem, size = 0x12000, scoped, tag = 'internal scratch']
  %s0 = inlined_call_operand.hbm [shape: f32[8,256], index: 0, kind: input, shape index: {}]
  %s1 = inlined_call_operand.vmem [shape: s32[8,3], index: 1, kind: input, shape index: {}]
  %s2 = inlined_call_operand.hbm [shape: f32[1,1], index: 2, kind: output, shape index: {}]
  %s3 = sld [smem:[#allocation0]]
  $region26: #{tpu_custom_call.1} parent=0
    _
  %s5 = ssub.s32 1, %s3
  %s6 = scalar_select 0, %s5, %s3
  $region1: #{tpu_custom_call.1} parent=0
    #allocation2 [shape = 'u8[8192]{0}', space=vmem, size = 0x2000, scoped, tag = 'input window, operand 0, single buffered']
    #allocation3 [shape = 's32[1]{0}', space=sflag, size = 0x4, scoped, tag = 'scoped memory for tpu_custom_call.1']
    #allocation4 [shape = 's32[1]{0}', space=sflag, size = 0x4, scoped, tag = 'scoped memory for tpu_custom_call.1']
    #allocation5 [shape = 'u8[512]{0}', space=vmem, size = 0x400, scoped, tag = 'output window, operand 0, single buffered']
    %7 = vsyncpa [#allocation3], 0
    %8 = vsyncpa [#allocation4], 0
    // Predicated region
    $region2: #{tpu_custom_call.1} parent=1 // pred_check
      _
    $region3: #{tpu_custom_call.1} parent=1 // pred_check_branch
      %10 = sbr.rel (0) target = $region5
    $region4: #{tpu_custom_call.1} parent=1 // pred_region
      %s12 = ssub.s32 256, 256
      %13 = vsyncadd [#allocation3], %s12
      %s15 = sshll.u32 [#allocation2], 4
      %s16 = int_to_ptr.vmem [resolvable:$true] %s15
      %18 = dma.hbm_to_vmem [thread:$0]  %s0, 256, %s16, [#allocation3]
    $region5: #{tpu_custom_call.1} parent=1 // pred_fallthru
      _
    // Predicated region
    $region6: #{tpu_custom_call.1} parent=1 // pred_check
      _
    $region7: #{tpu_custom_call.1} parent=1 // pred_check_branch
      %20 = sbr.rel (0) target = $region9
    $region8: #{tpu_custom_call.1} parent=1 // pred_region
      _
    $region9: #{tpu_custom_call.1} parent=1 // pred_fallthru
      _
    // Predicated region
    $region10: #{tpu_custom_call.1} parent=1 // pred_check
      _
    $region11: #{tpu_custom_call.1} parent=1 // pred_check_branch
      %22 = sbr.rel (0) target = $region13
    $region12: #{tpu_custom_call.1} parent=1 // pred_region
      %23 = dma.done [#allocation3], 256
    $region13: #{tpu_custom_call.1} parent=1 // pred_fallthru
      _
    %p24 = scmp.eq.s32.totalorder 0, 0
    // Predicated region
    $region14: #{tpu_custom_call.1} parent=1 // pred_check
      %p25 = pneg %p24
    $region15: #{tpu_custom_call.1} parent=1 // pred_check_branch
      %27 = sbr.rel (%p25) target = $region17
    $region16: #{tpu_custom_call.1} parent=1 // pred_region
      %vm28 = vcmask 0
      %29 = vst.msk [vmem:[#allocation5] sm:$0x1] %vm28, 0.0
    $region17: #{tpu_custom_call.1} parent=1 // pred_fallthru
      _
    %v30 = vld [vmem:[#allocation2] sm:$0xff]
    %v31 = vld [vmem:[#allocation2 + $0x8] sm:$0xff]
    %v32 = vld [vmem:[%s1] sm:$0xff]
    %v33 = vlaneseq
    %v34 = vand.u32 %v33, 127
    %v35 = vadd.s32 %v34, 128
    %36 = vset.pattern.permute.xlu0 0
    %37 = vperm.xlu0 %36, %v32
    %v38 = vpop.permute.xlu0 %37
    %vm39 = vcmp.eq.s32.totalorder %v34, %v38
    %vm40 = vcmp.eq.s32.totalorder %v35, %v38
    %41 = vset.pattern.permute.xlu0 1
    %42 = vperm.xlu0 %41, %v32
    %v43 = vpop.permute.xlu0 %42
    %vm44 = vcmp.eq.s32.totalorder %v34, %v43
    %vm45 = vcmp.eq.s32.totalorder %v35, %v43
    %vm46 = vmor %vm39, %vm44
    %vm47 = vmor %vm40, %vm45
    %48 = vset.pattern.permute.xlu0 2
    %49 = vperm.xlu0 %48, %v32
    %v50 = vpop.permute.xlu0 %49
    %vm51 = vcmp.eq.s32.totalorder %v34, %v50
    %vm52 = vcmp.eq.s32.totalorder %v35, %v50
    %vm53 = vmor %vm46, %vm51
    %vm54 = vmor %vm47, %vm52
    %v55 = vmax.f32 %v30, 1e-08
    %v56 = vmax.f32 %v31, 1e-08
    %v57 = vmin.f32 %v55, 1.0
    %v58 = vmin.f32 %v56, 1.0
    %v59 = vlog2.pop %v57
    %v60 = vmul.f32 %v59, 0.6931472
    %v61 = vlog2.pop %v58
    %v62 = vmul.f32 %v61, 0.6931472
    %v63 = vsub.f32 1.0, %v57
    %v64 = vsub.f32 1.0, %v58
    %v65 = vlog2.pop %v63
    %v66 = vmul.f32 %v65, 0.6931472
    %v67 = vlog2.pop %v64
    %v68 = vmul.f32 %v67, 0.6931472
    %v69 = vsel %vm53, %v60, %v66
    %v70 = vsel %vm54, %v62, %v68
    %v71 = vsub.f32 0.0, %v69
    %v72 = vsub.f32 0.0, %v70
    %v73 = vsel %vm53, %v63, %v57
    %v74 = vsel %vm54, %v64, %v58
    %v75 = vsel %vm53, 0.25, 0.75
    %v76 = vsel %vm54, 0.25, 0.75
    %v77 = vmul.f32 %v73, %v73
    %v78 = vmul.f32 %v74, %v74
    %v79 = vmul.f32 %v75, %v77
    %v80 = vmul.f32 %v76, %v78
    %v81 = vmul.f32 %v79, %v71
    %v82 = vmul.f32 %v80, %v72
    %v83 = vld [vmem:[#allocation5] sm:$0x1]
    %v84 = vadd.f32 %v81, %v82
    %85 = vadd.xlane.f32.xlu0 %v84
    %v86 = vpop.xlane.xlu0 %85
    %v87 = vrot.slane %v86, 4
    %v88 = vadd.f32 %v86, %v87
    %v89 = vrot.slane %v88, 2
    %v90 = vadd.f32 %v88, %v89
    %v91 = vrot.slane %v90, 1
    %v92 = vadd.f32 %v90, %v91
    %s93 = vtos %v92
    %v94 = vstv %s93
    %v95 = vadd.f32 %v83, %v94
    %vm96 = vcmask 0
    %97 = vst.msk [vmem:[#allocation5] sm:$0x1] %vm96, %v95
    // Predicated region
    $region18: #{tpu_custom_call.1} parent=1 // pred_check
      _
    $region19: #{tpu_custom_call.1} parent=1 // pred_check_branch
      %99 = sbr.rel (0) target = $region21
    $region20: #{tpu_custom_call.1} parent=1 // pred_region
      %s101 = ssub.s32 16, 16
      %102 = vsyncadd [#allocation4], %s101
      %s104 = sshll.u32 [#allocation5], 4
      %s105 = int_to_ptr.vmem [resolvable:$true] %s104
      %107 = dma.vmem_to_hbm [thread:$0]  %s105, 16, %s2, [#allocation4]
    $region21: #{tpu_custom_call.1} parent=1 // pred_fallthru
      _
    // Predicated region
    $region22: #{tpu_custom_call.1} parent=1 // pred_check
      _
    $region23: #{tpu_custom_call.1} parent=1 // pred_check_branch
      %109 = sbr.rel (0) target = $region25
    $region24: #{tpu_custom_call.1} parent=1 // pred_region
      %110 = dma.done [#allocation4], 16
    $region25: #{tpu_custom_call.1} parent=1 // pred_fallthru
      _
    %111 = vsyncpa [#allocation3], 1
    %112 = vsyncpa [#allocation4], 1

</llo_original>
